<compile_context>
chip_gen: v7x
topology: tpu7x:2x2x1
jax: 0.10.0
libtpu: 0.0.40
codegen_flags: <defaults>
</compile_context>

<pallas_src>
import functools

import jax
import jax.numpy as jnp
from jax.experimental import pallas as pl
from jax.experimental.pallas import tpu as pltpu


def _round_up(x, m):
    return ((x + m - 1) // m) * m


def guu_gather_sum_kernel(ids_ref, p_hbm, out_ref, rowbuf, sem, acc, *, seq_len):
    """One grid step = one (batch, insert/delete) output row.

    ids_ref : SMEM (B*2*S,) int32   flattened token ids (scalar prefetch)
    p_hbm   : HBM  (V, H2pad) f32   precomputed embed @ W^T (pl.ANY, manual DMA)
    out_ref : VMEM (1,1,1,H2pad)    output block for this (b, pair)
    rowbuf  : VMEM (2,1,H2pad)      double buffer for gathered rows
    sem     : DMA semaphores (2,)
    acc     : VMEM (1,H2pad) f32    running sum over the sequence
    """
    b = pl.program_id(0)
    pair = pl.program_id(1)
    base = (b * pl.num_programs(1) + pair) * seq_len

    def start_row_fetch(s, slot):
        row = ids_ref[base + s]
        pltpu.make_async_copy(
            p_hbm.at[pl.ds(row, 1)], rowbuf.at[slot], sem.at[slot]
        ).start()

    # Prime the pipeline, zero the accumulator while the first DMA is in flight.
    start_row_fetch(0, 0)
    acc[...] = jnp.zeros_like(acc)

    @pl.loop(0, seq_len)
    def _(s):
        slot = s & 1
        # Wait for the row belonging to token s (descriptor only needs dst/sem).
        pltpu.make_async_copy(
            p_hbm.at[pl.ds(0, 1)], rowbuf.at[slot], sem.at[slot]
        ).wait()

        # Prefetch token s+1 into the other buffer while we accumulate.
        @pl.when(s + 1 < seq_len)
        def _():
            start_row_fetch(s + 1, 1 - slot)

        acc[...] += rowbuf[slot]

    out_ref[...] = acc[...].reshape(out_ref.shape).astype(out_ref.dtype)


def prepare_guu_params(embed_table, w_prenoise):
    """One-time weight prep (amortized across forward calls).

    embed_table : (V, E) f32
    w_prenoise  : (H2, E) f32  (nn.Linear(E, H2, bias=False).weight)
    returns       (V, H2pad) f32 table P (lane-dense padded) and H2.
    """
    H2 = w_prenoise.shape[0]
    p = jnp.dot(embed_table, w_prenoise.T, preferred_element_type=jnp.float32)
    h2pad = max(128, _round_up(H2, 128))
    if h2pad != H2:
        p = jnp.pad(p, ((0, 0), (0, h2pad - H2)))
    return p, H2


def guu_encoder_forward(added_ids, removed_ids, p_table, h2):
    """Eval-mode forward of GuuEncoder.

    added_ids, removed_ids : (B, S) int32
    p_table                : (V, H2pad) f32 from prepare_guu_params
    returns                : (B, 2*H2) f32  == cat([insert_set, delete_set], 1)
    """
    B, S = added_ids.shape
    V, h2pad = p_table.shape

    # Flat id layout: row i = b*2 + pair, tokens i*S : (i+1)*S.
    ids_flat = jnp.stack([added_ids, removed_ids], axis=1).reshape(-1)
    # Match torch.nn.Embedding-adjacent safety: clamp ids so the DMA gather
    # never reads out of bounds (jnp.take would clamp too).
    ids_flat = jnp.clip(ids_flat, 0, V - 1).astype(jnp.int32)

    out = pl.pallas_call(
        functools.partial(guu_gather_sum_kernel, seq_len=S),
        out_shape=jax.ShapeDtypeStruct((B, 2, 1, h2pad), jnp.float32),
        grid_spec=pltpu.PrefetchScalarGridSpec(
            num_scalar_prefetch=1,
            grid=(B, 2),
            in_specs=[pl.BlockSpec(memory_space=pl.ANY)],   # P stays in HBM
            out_specs=pl.BlockSpec(
                (1, 1, 1, h2pad), lambda b, p, ids: (b, p, 0, 0)
            ),
            scratch_shapes=[
                pltpu.VMEM((2, 1, h2pad), jnp.float32),     # double-buffered row
                pltpu.SemaphoreType.DMA((2,)),
                pltpu.VMEM((1, h2pad), jnp.float32),        # f32 accumulator
            ],
        ),
        compiler_params=pltpu.CompilerParams(
            dimension_semantics=("parallel", "parallel"),
        ),
    )(ids_flat, p_table)

    # (B, 2, 1, H2pad) -> (B, 2*H2); reshape/slice of a tiny output.
    return out[:, :, 0, :h2].reshape(B, 2 * h2)


if __name__ == "__main__":
    # Small, deterministic example shapes consistent with the module:
    #   batch=2, seq=8, vocab=64, embedding_dim=32, hidden_size=64 (-> H/2 = 32)
    B, S, V, E, H = 2, 8, 64, 32, 64
    H2 = H // 2

    key = jax.random.PRNGKey(0)
    k_emb, k_w, k_add, k_rem = jax.random.split(key, 4)

    embed_table = jax.random.normal(k_emb, (V, E), dtype=jnp.float32) * 0.1
    # nn.Linear(E, H2, bias=False).weight has shape (H2, E)
    w_prenoise = jax.random.normal(k_w, (H2, E), dtype=jnp.float32) * 0.1

    added_ids = jax.random.randint(k_add, (B, S), 0, V, dtype=jnp.int32)
    removed_ids = jax.random.randint(k_rem, (B, S), 0, V, dtype=jnp.int32)

    p_table, h2 = prepare_guu_params(embed_table, w_prenoise)
    out = guu_encoder_forward(added_ids, removed_ids, p_table, h2)
    out = jax.block_until_ready(out)

    # Pure-JAX reference check (original, un-refolded math).
    ref_add = jnp.take(embed_table, added_ids, axis=0).sum(axis=1) @ w_prenoise.T
    ref_rem = jnp.take(embed_table, removed_ids, axis=0).sum(axis=1) @ w_prenoise.T
    ref = jnp.concatenate([ref_add, ref_rem], axis=1)

    assert out.shape == (B, H)
    assert jnp.allclose(out, ref, atol=1e-4, rtol=1e-4)

    print("KERNEL_OK")
</pallas_src>

<mosaic_0001>
module attributes {stable_mosaic.version = 11 : i64} {
  func.func @guu_gather_sum_kernel(%arg0: i32, %arg1: i32, %arg2: memref<32xi32, #tpu.memory_space<smem>>, %arg3: memref<64x128xf32, #tpu.memory_space<any>>, %arg4: memref<1x1x1x128xf32, #tpu.memory_space<vmem>>, %arg5: memref<2x1x128xf32, #tpu.memory_space<vmem>>, %arg6: memref<2x!tpu.dma_semaphore, #tpu.memory_space<semaphore_mem>>, %arg7: memref<1x128xf32, #tpu.memory_space<vmem>>) attributes {dimension_semantics = [#tpu.dimension_semantics<parallel>, #tpu.dimension_semantics<parallel>], iteration_bounds = array<i64: 2, 2>, scalar_prefetch = 1 : i64, scratch_operands = 3 : i64, tpu.core_type = #tpu.core_type<tc>, window_params = [{}, {transform_indices = @transform_1, window_bounds = array<i64: 1, 1, 1, 128>}]} {
    %c2_i32 = arith.constant 2 : i32
    %0 = arith.muli %arg0, %c2_i32 : i32
    %1 = arith.addi %0, %arg1 : i32
    %c8_i32 = arith.constant 8 : i32
    %2 = arith.muli %1, %c8_i32 : i32
    %c0_i32 = arith.constant 0 : i32
    %3 = arith.addi %2, %c0_i32 : i32
    %4 = arith.index_cast %3 : i32 to index
    %5 = memref.load %arg2[%4] : memref<32xi32, #tpu.memory_space<smem>>
    %c0_i32_0 = arith.constant 0 : i32
    %c0_i32_1 = arith.constant 0 : i32
    %c0_i32_2 = arith.constant 0 : i32
    %6 = tpu.memref_slice %arg3[%5, %c0_i32_2] : memref<64x128xf32, #tpu.memory_space<any>> -> memref<1x128xf32, #tpu.memory_space<any>>
    %c0_i32_3 = arith.constant 0 : i32
    %c0_i32_4 = arith.constant 0 : i32
    %7 = tpu.memref_slice %arg5[%c0_i32_0, %c0_i32_3, %c0_i32_4] : memref<2x1x128xf32, #tpu.memory_space<vmem>> -> memref<1x1x128xf32, #tpu.memory_space<vmem>>
    %8 = tpu.memref_squeeze %7 : memref<1x1x128xf32, #tpu.memory_space<vmem>> -> memref<1x128xf32, #tpu.memory_space<vmem>>
    %9 = tpu.memref_slice %arg6[%c0_i32_1] : memref<2x!tpu.dma_semaphore, #tpu.memory_space<semaphore_mem>> -> memref<1x!tpu.dma_semaphore, #tpu.memory_space<semaphore_mem>>
    %10 = tpu.memref_squeeze %9 : memref<1x!tpu.dma_semaphore, #tpu.memory_space<semaphore_mem>> -> memref<!tpu.dma_semaphore, #tpu.memory_space<semaphore_mem>>
    tpu.enqueue_dma source(%6 : memref<1x128xf32, #tpu.memory_space<any>>) target(%8 : memref<1x128xf32, #tpu.memory_space<vmem>>) target_semaphore(%10 : memref<!tpu.dma_semaphore, #tpu.memory_space<semaphore_mem>>)
    %cst = arith.constant 0.000000e+00 : f32
    %11 = vector.broadcast %cst : f32 to vector<1x128xf32>
    %c0 = arith.constant 0 : index
    %c0_5 = arith.constant 0 : index
    %12 = vector.load %arg7[%c0, %c0_5] : memref<1x128xf32, #tpu.memory_space<vmem>>, vector<1x128xf32>
    tpu.vector_store %arg7[%c0, %c0_5], %11 {strides = array<i32>} : memref<1x128xf32, #tpu.memory_space<vmem>>, vector<1x128xf32>,
    %c0_i32_6 = arith.constant 0 : i32
    %c8_i32_7 = arith.constant 8 : i32
    %13 = arith.addi %c0_i32_6, %c8_i32_7 : i32
    %c1_i32 = arith.constant 1 : i32
    scf.for %arg8 = %c0_i32_6 to %13 step %c1_i32  : i32 {
      %c1_i32_15 = arith.constant 1 : i32
      %17 = arith.muli %arg8, %c1_i32_15 : i32
      %c0_i32_16 = arith.constant 0 : i32
      %18 = arith.addi %c0_i32_16, %17 : i32
      %c1_i32_17 = arith.constant 1 : i32
      %19 = arith.andi %18, %c1_i32_17 : i32
      %c0_i32_18 = arith.constant 0 : i32
      %c0_i32_19 = arith.constant 0 : i32
      %20 = tpu.memref_slice %arg3[%c0_i32_18, %c0_i32_19] : memref<64x128xf32, #tpu.memory_space<any>> -> memref<1x128xf32, #tpu.memory_space<any>>
      %c0_i32_20 = arith.constant 0 : i32
      %c0_i32_21 = arith.constant 0 : i32
      %21 = tpu.memref_slice %arg5[%19, %c0_i32_20, %c0_i32_21] : memref<2x1x128xf32, #tpu.memory_space<vmem>> -> memref<1x1x128xf32, #tpu.memory_space<vmem>>
      %22 = tpu.memref_squeeze %21 : memref<1x1x128xf32, #tpu.memory_space<vmem>> -> memref<1x128xf32, #tpu.memory_space<vmem>>
      %23 = tpu.memref_slice %arg6[%19] : memref<2x!tpu.dma_semaphore, #tpu.memory_space<semaphore_mem>> -> memref<1x!tpu.dma_semaphore, #tpu.memory_space<semaphore_mem>>
      %24 = tpu.memref_squeeze %23 : memref<1x!tpu.dma_semaphore, #tpu.memory_space<semaphore_mem>> -> memref<!tpu.dma_semaphore, #tpu.memory_space<semaphore_mem>>
      tpu.wait_dma2 semaphore(%24 : memref<!tpu.dma_semaphore, #tpu.memory_space<semaphore_mem>>) src(%20 : memref<1x128xf32, #tpu.memory_space<any>>) dst(%22 : memref<1x128xf32, #tpu.memory_space<vmem>>)
      %c1_i32_22 = arith.constant 1 : i32
      %25 = arith.addi %18, %c1_i32_22 : i32
      %c8_i32_23 = arith.constant 8 : i32
      %26 = arith.cmpi slt, %25, %c8_i32_23 : i32
      %27 = arith.extui %26 : i1 to i32
      %c0_i32_24 = arith.constant 0 : i32
      %28 = arith.cmpi ne, %27, %c0_i32_24 : i32
      scf.if %28 {
        %c1_i32_31 = arith.constant 1 : i32
        %35 = arith.addi %18, %c1_i32_31 : i32
        %c1_i32_32 = arith.constant 1 : i32
        %36 = arith.subi %c1_i32_32, %19 : i32
        %37 = arith.addi %2, %35 : i32
        %38 = arith.index_cast %37 : i32 to index
        %39 = memref.load %arg2[%38] : memref<32xi32, #tpu.memory_space<smem>>
        %c0_i32_33 = arith.constant 0 : i32
        %40 = tpu.memref_slice %arg3[%39, %c0_i32_33] : memref<64x128xf32, #tpu.memory_space<any>> -> memref<1x128xf32, #tpu.memory_space<any>>
        %c0_i32_34 = arith.constant 0 : i32
        %c0_i32_35 = arith.constant 0 : i32
        %41 = tpu.memref_slice %arg5[%36, %c0_i32_34, %c0_i32_35] : memref<2x1x128xf32, #tpu.memory_space<vmem>> -> memref<1x1x128xf32, #tpu.memory_space<vmem>>
        %42 = tpu.memref_squeeze %41 : memref<1x1x128xf32, #tpu.memory_space<vmem>> -> memref<1x128xf32, #tpu.memory_space<vmem>>
        %43 = tpu.memref_slice %arg6[%36] : memref<2x!tpu.dma_semaphore, #tpu.memory_space<semaphore_mem>> -> memref<1x!tpu.dma_semaphore, #tpu.memory_space<semaphore_mem>>
        %44 = tpu.memref_squeeze %43 : memref<1x!tpu.dma_semaphore, #tpu.memory_space<semaphore_mem>> -> memref<!tpu.dma_semaphore, #tpu.memory_space<semaphore_mem>>
        tpu.enqueue_dma source(%40 : memref<1x128xf32, #tpu.memory_space<any>>) target(%42 : memref<1x128xf32, #tpu.memory_space<vmem>>) target_semaphore(%44 : memref<!tpu.dma_semaphore, #tpu.memory_space<semaphore_mem>>)
      } else {
      }
      %c0_25 = arith.constant 0 : index
      %c0_26 = arith.constant 0 : index
      %29 = vector.load %arg7[%c0_25, %c0_26] : memref<1x128xf32, #tpu.memory_space<vmem>>, vector<1x128xf32>
      %30 = arith.index_cast %19 : i32 to index
      %c0_27 = arith.constant 0 : index
      %c0_28 = arith.constant 0 : index
      %31 = vector.load %arg5[%30, %c0_27, %c0_28] : memref<2x1x128xf32, #tpu.memory_space<vmem>>, vector<1x1x128xf32>
      %32 = vector.shape_cast %31 : vector<1x1x128xf32> to vector<1x128xf32>
      %33 = arith.addf %29, %32 : vector<1x128xf32>
      %c0_29 = arith.constant 0 : index
      %c0_30 = arith.constant 0 : index
      %34 = vector.load %arg7[%c0_29, %c0_30] : memref<1x128xf32, #tpu.memory_space<vmem>>, vector<1x128xf32>
      tpu.vector_store %arg7[%c0_29, %c0_30], %33 {strides = array<i32>} : memref<1x128xf32, #tpu.memory_space<vmem>>, vector<1x128xf32>,
    }
    %c8_i32_8 = arith.constant 8 : i32
    %c0_9 = arith.constant 0 : index
    %c0_10 = arith.constant 0 : index
    %14 = vector.load %arg7[%c0_9, %c0_10] : memref<1x128xf32, #tpu.memory_space<vmem>>, vector<1x128xf32>
    %15 = vector.shape_cast %14 : vector<1x128xf32> to vector<1x1x1x128xf32>
    %c0_11 = arith.constant 0 : index
    %c0_12 = arith.constant 0 : index
    %c0_13 = arith.constant 0 : index
    %c0_14 = arith.constant 0 : index
    %16 = vector.load %arg4[%c0_11, %c0_12, %c0_13, %c0_14] : memref<1x1x1x128xf32, #tpu.memory_space<vmem>>, vector<1x1x1x128xf32>
    tpu.vector_store %arg4[%c0_11, %c0_12, %c0_13, %c0_14], %15 {strides = array<i32>} : memref<1x1x1x128xf32, #tpu.memory_space<vmem>>, vector<1x1x1x128xf32>,
    return
  }
  func.func @transform_1(%arg0: i32, %arg1: i32, %arg2: memref<32xi32, #tpu.memory_space<smem>>) -> (i32, i32, i32, i32) {
    %c0_i32 = arith.constant 0 : i32
    %c0_i32_0 = arith.constant 0 : i32
    %c0_i32_1 = arith.constant 0 : i32
    return %arg0, %arg1, %c0_i32, %c0_i32_0 : i32, i32, i32, i32
  }
}

</mosaic_0001>

<llo_original>
// kernel: tpu_custom_call.1
$region0: #{tpu_custom_call.1}
  #allocation0 [shape = 'u32[]', space=smem, size = 0x4, offset = 0x4, fixed_abs, tag = 'smem constant byte address 0x4 - core index']
  #allocation1 [shape = 'u32[144,128]{1,0:T(1,128)}', space=vmem, size = 0x12000, scoped, tag = 'internal scratch']
  #allocation2 [shape = 'f32[2,1,128]{2,1,0:T(1,128)}', space=vmem, size = 0x400, scoped, tag = 'scratch operand']
  #allocation3 [shape = 's32[2]{0}', space=sflag, size = 0x8, scoped, tag = 'scratch operand']
  #allocation4 [shape = 'f32[1,128]{1,0:T(1,128)}', space=vmem, size = 0x200, scoped, tag = 'scratch operand']
  #allocation5 [shape = 's32[1]{0}', space=sflag, size = 0x4, scoped, tag = 'scoped memory for tpu_custom_call.1']
  #allocation6 [shape = 'u8[512]{0}', space=smem, size = 0x200, scoped, tag = 'prefetched SMEM operand 0']
  #allocation9 [shape = 's32[]', space=sflag, size = 0x4, offset = 0, fixed_abs, tag = 'sflag constant byte address 0x0 - dummy sync flag']
  #allocation10 [shape = 's32[]', space=sflag, size = 0x4, offset = 0, fixed_abs, tag = 'sflag constant byte address 0x0 - dummy sync flag']
  #allocation11 [shape = 'u32[]', space=smem, size = 0x4, offset = 0x44, fixed_abs, tag = 'smem constant byte address 0x44 - assertion arg 0']
  #allocation12 [shape = 'u32[]', space=smem, size = 0x4, offset = 0x48, fixed_abs, tag = 'smem constant byte address 0x48 - assertion arg 1']
  #allocation13 [shape = 's32[]', space=sflag, size = 0x4, offset = 0, fixed_abs, tag = 'sflag constant byte address 0x0 - dummy sync flag']
  #allocation14 [shape = 's32[]', space=sflag, size = 0x4, offset = 0, fixed_abs, tag = 'sflag constant byte address 0x0 - dummy sync flag']
  %s0 = inlined_call_operand.hbm [shape: s32[32], index: 0, kind: input, shape index: {}]
  %s1 = inlined_call_operand.hbm [shape: f32[64,128], index: 1, kind: input, shape index: {}]
  %s2 = inlined_call_operand.hbm [shape: f32[2,2,1,128], index: 2, kind: output, shape index: {}]
  %s3 = sld [smem:[#allocation0]]
  $region44: #{tpu_custom_call.1} parent=0
    _
  %s5 = ssub.s32 1, %s3
  %s6 = scalar_select 0, %s5, %s3
  %8 = dma.hbm_to_smem %s0, 16, [#allocation6], [#allocation5]
  %9 = dma.done [#allocation5], 16
  %10 = sfence
  $region1: #{tpu_custom_call.1} parent=0
    #allocation7 [shape = 'u8[1024]{0}', space=vmem, size = 0x400, scoped, tag = 'output window, operand 0']
    #allocation8 [shape = 's32[2]{0}', space=sflag, size = 0x8, scoped, tag = 'scoped memory for tpu_custom_call.1']
    %11 = vsyncpa [#allocation8], 0
    %s12 = scalar_lea.sflag [#allocation8], 1
    %13 = vsyncpa %s12, 0
    loop: start=0, step=1, limit=5
    $region2: #{tpu_custom_call.1} parent=1 // loop_pre_header
      _
    $region3: #{tpu_custom_call.1} parent=1 // loop_header
      %s15 = sphi 0, %s19
      %p16 = scmp.ge.s32.totalorder %s15, 5
      %s21 = sphi 0, %s31
      %s22 = sphi 0, %s27
      %s23 = sphi 0, %s21
      %s24 = sphi 0, %s22
      %s36 = sphi 0, %s38
      %s39 = sphi 0, %s36
      %s49 = sphi 0, %s39
    $region4: #{tpu_custom_call.1} parent=1 // loop_header_branch
      %18 = sbr.rel (%p16) target = $region8
    $region5: #{tpu_custom_call.1} parent=1 // loop_body
      %s20 = ssub.s32 %s15, 1
      %s25 = sadd.s32 1, %s22
      %p26 = scmp.ge.s32.totalorder %s25, 2
      %s27 = scalar_select %p26, 0, %s25
      %s28 = sadd.s32 1, %s21
      %s29 = scalar_select %p26, %s28, %s21
      %p30 = scmp.ge.s32.totalorder %s29, 2
      %s31 = scalar_select %p30, 0, %s29
      %s32 = ssub.s32 %s21, %s31
      %s33 = ssub.s32 %s22, %s27
      %s34 = sor.u32 %s32, %s33
      %p35 = scmp.eq.s32.totalorder %s34, 0
      %s37 = sadd.s32 %s36, 1
      %s38 = scalar_select %p35, %s36, %s37
      %p40 = pneg %p35
      %p41 = scmp.eq.s32.totalorder %s15, 3
      %p42 = por %p40, %p41
      %p43 = scmp.ne.s32.totalorder %s36, %s39
      %p44 = scmp.eq.s32.totalorder %s15, 0
      %p45 = por %p43, %p44
      %p46 = scmp.ne.s32.totalorder %s36, %s39
      %p47 = scmp.eq.s32.totalorder %s20, 3
      %p48 = por %p46, %p47
      %p50 = scmp.ne.s32.totalorder %s39, %s49
      %p51 = scmp.eq.s32.totalorder %s20, 0
      %p52 = por %p50, %p51
      %p53 = scmp.lt.s32.totalorder %s15, 4
      // Predicated region
      $region9: #{tpu_custom_call.1} parent=5 // pred_check
        %p54 = pneg %p53
      $region10: #{tpu_custom_call.1} parent=5 // pred_check_branch
        %56 = sbr.rel (%p54) target = $region12
      $region11: #{tpu_custom_call.1} parent=5 // pred_region
        %p57 = pneg %p45
        %p58 = pneg %p42
        %s59 = sand.u32 %s36, 1
        %s60 = scalar_lea.sflag [#allocation8], %s59
        %s61 = sand.u32 %s36, 1
        %s62 = scalar_lea.vmem [#allocation7], %s61
        %s63 = smul.u32 %s21, 2
        %s64 = sadd.s32 %s63, %s22
        %s65 = smul.u32 %s64, 8
        %s66 = sld [smem:[#allocation6 + %s65]]
        %s67 = smul.addr %s66, 16
        %s68 = scalar_lea.hbm %s1, %s67
        // Predicated region
        $region13: #{tpu_custom_call.1} parent=11 // pred_check
          _
        $region14: #{tpu_custom_call.1} parent=11 // pred_check_branch
          %70 = sbr.rel target = $region16
        $region15: #{tpu_custom_call.1} parent=11 // pred_region
          %71 = sst [smem:[#allocation11]] [#allocation10]
          %72 = sst [smem:[#allocation12]] [#allocation9]
        $region16: #{tpu_custom_call.1} parent=11 // pred_fallthru
          _
        %74 = shalt.err (0)
        %s76 = sshll.u32 [#allocation2], 4
        %s77 = int_to_ptr.vmem [resolvable:$true] %s76
        %79 = dma.hbm_to_vmem [thread:$0]  %s68, 16, %s77, [#allocation3]
        %80 = vst [vmem:[#allocation4] sm:$0x1] 0.0
        loop: start=0, step=1, limit=8
        $region17: #{tpu_custom_call.1} parent=11 // loop_pre_header
          _
        $region18: #{tpu_custom_call.1} parent=11 // loop_header
          %s82 = sphi 0, %s86
          %p83 = scmp.ge.s32.totalorder %s82, 8
        $region19: #{tpu_custom_call.1} parent=11 // loop_header_branch
          %85 = sbr.rel (%p83) target = $region23
        $region20: #{tpu_custom_call.1} parent=11 // loop_body
          %s87 = sand.u32 %s82, 1
          %s88 = scalar_lea.vmem [#allocation2], %s87
          %s89 = scalar_lea.sflag [#allocation3], %s87
          %s90 = smul.u32 1, 1
          %s91 = sshll.u32 %s90, 4
          %92 = dma.done %s89, %s91
          %s93 = sadd.s32 %s82, 1
          %p94 = scmp.lt.s32.totalorder %s93, 8
          // Predicated region
          $region24: #{tpu_custom_call.1} parent=20 // pred_check
            %p95 = pneg %p94
          $region25: #{tpu_custom_call.1} parent=20 // pred_check_branch
            %97 = sbr.rel (%p95) target = $region27
          $region26: #{tpu_custom_call.1} parent=20 // pred_region
            %s98 = ssub.s32 1, %s87
            %s99 = sadd.s32 %s65, %s93
            %s100 = sld [smem:[#allocation6 + %s99]]
            %s101 = smul.addr %s100, 16
            %s102 = scalar_lea.hbm %s1, %s101
            %s103 = scalar_lea.vmem [#allocation2], %s98
            %s104 = scalar_lea.sflag [#allocation3], %s98
            // Predicated region
            $region28: #{tpu_custom_call.1} parent=26 // pred_check
              _
            $region29: #{tpu_custom_call.1} parent=26 // pred_check_branch
              %106 = sbr.rel target = $region31
            $region30: #{tpu_custom_call.1} parent=26 // pred_region
              %107 = sst [smem:[#allocation11]] [#allocation14]
              %108 = sst [smem:[#allocation12]] [#allocation13]
            $region31: #{tpu_custom_call.1} parent=26 // pred_fallthru
              _
            %110 = shalt.err (0)
            %s112 = sshll.u32 %s103, 4
            %s113 = int_to_ptr.vmem [resolvable:$true] %s112
            %115 = dma.hbm_to_vmem [thread:$0]  %s102, 16, %s113, %s104
          $region27: #{tpu_custom_call.1} parent=20 // pred_fallthru
            _
          %v116 = vld [vmem:[#allocation4] sm:$0x1]
          %v117 = vld [vmem:[%s88] sm:$0x1]
          %v118 = vadd.f32 %v116, %v117
          %119 = vst [vmem:[#allocation4] sm:$0x1] %v118
        $region21: #{tpu_custom_call.1} parent=11 // loop_footer
          %s86 = sadd.s32 1, %s82
        $region22: #{tpu_custom_call.1} parent=11 // loop_footer_branch
          %81 = sbr.rel target = $region18
        $region23: #{tpu_custom_call.1} parent=11 // loop_exit
          _
        %v120 = vld [vmem:[#allocation4] sm:$0x1]
        %121 = vst [vmem:[%s62] sm:$0x1] %v120
        %s122 = sand.u32 %s36, 1
        %s123 = scalar_lea.sflag [#allocation8], %s122
        %s124 = sand.u32 %s36, 1
        %s125 = scalar_lea.vmem [#allocation7], %s124
        // Predicated region
        $region32: #{tpu_custom_call.1} parent=11 // pred_check
          %p126 = pneg %p42
        $region33: #{tpu_custom_call.1} parent=11 // pred_check_branch
          %128 = sbr.rel (%p126) target = $region35
        $region34: #{tpu_custom_call.1} parent=11 // pred_region
          %s130 = ssub.s32 16, 16
          %131 = vsyncadd %s123, %s130
          %s132 = smul.addr %s21, 2
          %s133 = sadd.s32 %s22, %s132
          %s134 = smul.addr %s133, 16
          %s135 = scalar_lea.hbm %s2, %s134
          %s137 = sshll.u32 %s125, 4
          %s138 = int_to_ptr.vmem [resolvable:$true] %s137
          %140 = dma.vmem_to_hbm [thread:$0]  %s138, 16, %s135, %s123
        $region35: #{tpu_custom_call.1} parent=11 // pred_fallthru
          _
      $region12: #{tpu_custom_call.1} parent=5 // pred_fallthru
        _
      %p141 = scmp.le.s32.totalorder 1, %s15
      // Predicated region
      $region36: #{tpu_custom_call.1} parent=5 // pred_check
        %p142 = pneg %p141
      $region37: #{tpu_custom_call.1} parent=5 // pred_check_branch
        %144 = sbr.rel (%p142) target = $region39
      $region38: #{tpu_custom_call.1} parent=5 // pred_region
        %s145 = ssub.s32 %s15, 1
        // Predicated region
        $region40: #{tpu_custom_call.1} parent=38 // pred_check
          %p146 = pneg %p48
        $region41: #{tpu_custom_call.1} parent=38 // pred_check_branch
          %148 = sbr.rel (%p146) target = $region43
        $region42: #{tpu_custom_call.1} parent=38 // pred_region
          %s149 = sand.u32 %s39, 1
          %s150 = scalar_lea.sflag [#allocation8], %s149
          %s151 = sand.u32 %s39, 1
          %s152 = scalar_lea.vmem [#allocation7], %s151
          %153 = dma.done %s150, 16
        $region43: #{tpu_custom_call.1} parent=38 // pred_fallthru
          _
      $region39: #{tpu_custom_call.1} parent=5 // pred_fallthru
        _
    $region6: #{tpu_custom_call.1} parent=1 // loop_footer
      %s19 = sadd.s32 1, %s15
    $region7: #{tpu_custom_call.1} parent=1 // loop_footer_branch
      %14 = sbr.rel target = $region3
    $region8: #{tpu_custom_call.1} parent=1 // loop_exit
      _
    %154 = vsyncpa [#allocation8], 1
    %s155 = scalar_lea.sflag [#allocation8], 1
    %156 = vsyncpa %s155, 1
  %157 = vsyncmov [#allocation3]
  %s158 = vpop.sfrf %157
  %p159 = scmp.eq.s32.totalorder %s158, 0
  %p160 = pneg %p159
  %162 = shalt.err (%p160)
  %s163 = scalar_lea.sflag [#allocation3], 1
  %164 = vsyncmov %s163
  %s165 = vpop.sfrf %164
  %p166 = scmp.eq.s32.totalorder %s165, 0
  %p167 = pneg %p166
  %169 = shalt.err (%p167)

</llo_original>
